<compile_context>
chip_gen: v7x
topology: tpu7x:2x2x1
jax: 0.10.0
libtpu: 0.0.40
codegen_flags: <defaults>
</compile_context>

<pallas_src>
import functools

import jax
import jax.numpy as jnp
from jax.experimental import pallas as pl
from jax.experimental.pallas import tpu as pltpu

_LANE = 128
_SUBLANE = 8


def _round_up(x, m):
    return (x + m - 1) // m * m


def _cdiv(a, b):
    return -(-a // b)


def _pad2(a, rows, cols):
    pr, pc = rows - a.shape[0], cols - a.shape[1]
    if pr == 0 and pc == 0:
        return a
    return jnp.pad(a, ((0, pr), (0, pc)))


def _vmem_capacity_bytes():
    """Per-core VMEM capacity; conservative 64 MiB fallback (safe on all gens)."""
    try:
        return int(pltpu.get_tpu_info().vmem_capacity_bytes)
    except Exception:
        return 64 * 1024 * 1024


def _resident_spec(rows, cols):
    """Grid-invariant (VMEM-resident) block; single-buffered when supported."""
    idx = lambda i: (0, 0)
    try:
        return pl.BlockSpec((rows, cols), idx, pipeline_mode=pl.Buffered(1))
    except Exception:
        return pl.BlockSpec((rows, cols), idx)


# ---------------------------------------------------------------------------
# Kernels: one grid step processes a (tile_n, in_p) slab of rows.
# Weights arrive already in mm_dtype; biases / accumulation / residual in f32.
# ---------------------------------------------------------------------------
def _resnet_kernel_shortcut(x_ref, w0_ref, b0_ref, w1_ref, b1_ref, ws_ref,
                            o_ref, *, mm_dtype):
    x = x_ref[...].astype(jnp.float32)
    h = jnp.maximum(x, 0.0).astype(mm_dtype)                       # relu(x)
    net = jnp.dot(h, w0_ref[...],
                  preferred_element_type=jnp.float32) + b0_ref[...]
    net = jnp.maximum(net, 0.0).astype(mm_dtype)                   # relu(net)
    dx = jnp.dot(net, w1_ref[...],
                 preferred_element_type=jnp.float32) + b1_ref[...]
    # residual branch kept in f32 (precision parity with the identity path)
    x_s = jnp.dot(x, ws_ref[...], preferred_element_type=jnp.float32)
    o_ref[...] = (x_s + dx).astype(o_ref.dtype)


def _resnet_kernel_identity(x_ref, w0_ref, b0_ref, w1_ref, b1_ref,
                            o_ref, *, mm_dtype):
    x = x_ref[...].astype(jnp.float32)
    h = jnp.maximum(x, 0.0).astype(mm_dtype)
    net = jnp.dot(h, w0_ref[...],
                  preferred_element_type=jnp.float32) + b0_ref[...]
    net = jnp.maximum(net, 0.0).astype(mm_dtype)
    dx = jnp.dot(net, w1_ref[...],
                 preferred_element_type=jnp.float32) + b1_ref[...]
    o_ref[...] = (x + dx).astype(o_ref.dtype)


# ---------------------------------------------------------------------------
# Wrapper
# ---------------------------------------------------------------------------
@functools.partial(jax.jit, static_argnames=("tile_n", "use_bf16_matmul",
                                              "bf16_activations"))
def resnet_block_fc(x, params, *, tile_n=None, use_bf16_matmul=True,
                    bf16_activations=False):
    """ResnetBlockFC forward pass as a single batch-tiled Pallas kernel.

    x: (N, size_in)
    params:
        w0: (size_in, size_h)   (= fc_0.weight.T)
        b0: (1, size_h)
        w1: (size_h, size_out)  (= fc_1.weight.T; zero-initialized in module)
        b1: (1, size_out)
        ws: (size_in, size_out) or None  (= shortcut.weight.T, no bias)
    """
    n, size_in = x.shape
    w0, b0, w1, b1 = params["w0"], params["b0"], params["w1"], params["b1"]
    ws = params.get("ws", None)
    size_h = w0.shape[1]
    size_out = w1.shape[1]
    has_shortcut = ws is not None

    # --- lane-dense padded feature dims (multiples of 128) -----------------
    in_p = _round_up(size_in, _LANE)
    h_p = _round_up(size_h, _LANE)
    out_p = _round_up(size_out, _LANE)

    mm_dtype = jnp.bfloat16 if use_bf16_matmul else jnp.float32
    io_dtype = jnp.bfloat16 if bf16_activations else x.dtype
    mm_bytes = jnp.dtype(mm_dtype).itemsize
    io_bytes = jnp.dtype(io_dtype).itemsize

    # resident (grid-invariant) bytes: main weights in mm_dtype, biases f32,
    # shortcut weight kept f32.
    weight_bytes = mm_bytes * (in_p * h_p + h_p * out_p) + 4 * (h_p + out_p)
    if has_shortcut:
        weight_bytes += 4 * in_p * out_p

    # --- generation-aware VMEM budget (headroom below physical capacity) ---
    vmem_cap = _vmem_capacity_bytes()
    headroom = max(8 * 1024 * 1024, vmem_cap // 8)   # 8 MiB @64, 16 MiB @128
    budget = vmem_cap - headroom

    # --- batch tile: balanced, VMEM-adaptive, >=2 tiles for v7x megacore ---
    if tile_n is None:
        per_row = (2 * io_bytes * in_p          # double-buffered x tile
                   + 2 * io_bytes * out_p       # double-buffered out tile
                   + 4 * (in_p + h_p + out_p))  # f32 intermediates x32/net/dx
        # conservative: assume resident weight blocks are still double-buffered
        avail = max(budget - 2 * weight_bytes, per_row * _SUBLANE)
        max_tile = max(_SUBLANE,
                       min(4096, (avail // per_row) // _SUBLANE * _SUBLANE))
        min_tiles = 2 if n > _SUBLANE else 1    # keep both v7x cores busy
        num_tiles = max(_cdiv(n, max_tile), min_tiles)
        tile_n = _round_up(_cdiv(n, num_tiles), _SUBLANE)   # balanced last tile
    else:
        tile_n = max(_SUBLANE, _round_up(int(tile_n), _SUBLANE))
    grid_n = _cdiv(n, tile_n)
    n_p = grid_n * tile_n

    # --- zero-pad operands (mathematically inert, sliced off afterwards) ----
    x_p = _pad2(x.astype(io_dtype), n_p, in_p)
    w0_p = _pad2(w0.astype(mm_dtype), in_p, h_p)       # pre-cast in wrapper
    b0_p = _pad2(b0.astype(jnp.float32), 1, h_p)
    w1_p = _pad2(w1.astype(mm_dtype), h_p, out_p)      # pre-cast in wrapper
    b1_p = _pad2(b1.astype(jnp.float32), 1, out_p)

    # --- specs: x/out tiled over batch, weights/biases VMEM-resident --------
    x_spec = pl.BlockSpec((tile_n, in_p), lambda i: (i, 0))
    out_spec = pl.BlockSpec((tile_n, out_p), lambda i: (i, 0))

    in_specs = [
        x_spec,
        _resident_spec(in_p, h_p),
        _resident_spec(1, h_p),
        _resident_spec(h_p, out_p),
        _resident_spec(1, out_p),
    ]
    args = [x_p, w0_p, b0_p, w1_p, b1_p]

    if has_shortcut:
        ws_p = _pad2(ws.astype(jnp.float32), in_p, out_p)   # residual stays f32
        in_specs.append(_resident_spec(in_p, out_p))
        args.append(ws_p)
        kernel = functools.partial(_resnet_kernel_shortcut, mm_dtype=mm_dtype)
    else:
        kernel = functools.partial(_resnet_kernel_identity, mm_dtype=mm_dtype)

    # --- cost estimate (scheduling hint for XLA) ----------------------------
    flops = 2 * n_p * (in_p * h_p + h_p * out_p)
    if has_shortcut:
        flops += 2 * n_p * in_p * out_p
    bytes_accessed = io_bytes * n_p * (in_p + out_p) + weight_bytes
    cost = pl.CostEstimate(flops=int(flops), transcendentals=0,
                           bytes_accessed=int(bytes_accessed))

    out_padded = pl.pallas_call(
        kernel,
        out_shape=jax.ShapeDtypeStruct((n_p, out_p), io_dtype),
        grid=(grid_n,),
        in_specs=in_specs,
        out_specs=out_spec,
        compiler_params=pltpu.CompilerParams(
            dimension_semantics=("parallel",),    # shards batch across TCs (v7x)
            vmem_limit_bytes=int(budget)),
        cost_estimate=cost,
    )(*args)

    # Output dtype follows the streamed activation dtype (f32 unless
    # bf16_activations=True was explicitly requested).
    return out_padded[:n, :size_out]


# ---------------------------------------------------------------------------
# Parameter init mirroring the PyTorch module's __init__
# ---------------------------------------------------------------------------
def init_resnet_block_fc_params(key, size_in, size_out=None, size_h=None,
                                dtype=jnp.float32):
    if size_out is None:
        size_out = size_in
    if size_h is None:
        size_h = min(size_in, size_out)

    k0w, k0b, k1b, ksw = jax.random.split(key, 4)

    # torch.nn.Linear default init: U(-1/sqrt(fan_in), 1/sqrt(fan_in))
    def uni(k, shape, fan_in):
        bound = 1.0 / jnp.sqrt(jnp.asarray(fan_in, dtype))
        return jax.random.uniform(k, shape, dtype, minval=-bound, maxval=bound)

    w0 = uni(k0w, (size_in, size_h), size_in)       # fc_0.weight.T
    b0 = uni(k0b, (1, size_h), size_in)             # fc_0.bias
    w1 = jnp.zeros((size_h, size_out), dtype)       # fc_1.weight zero-init
    b1 = uni(k1b, (1, size_out), size_h)            # fc_1.bias (NOT zeroed)

    params = {"w0": w0, "b0": b0, "w1": w1, "b1": b1}
    if size_in != size_out:
        params["ws"] = uni(ksw, (size_in, size_out), size_in)  # shortcut, no bias
    else:
        params["ws"] = None
    return params


def _reference(x, params):
    x32 = x.astype(jnp.float32)
    net = jnp.maximum(x32, 0.0) @ params["w0"] + params["b0"]
    dx = jnp.maximum(net, 0.0) @ params["w1"] + params["b1"]
    x_s = x32 @ params["ws"] if params["ws"] is not None else x32
    return x_s + dx


if __name__ == "__main__":
    key = jax.random.PRNGKey(0)
    kx, kx2, kp1, kp2, kw1 = jax.random.split(key, 5)

    # Case 1: size_in != size_out -> linear shortcut path, exact f32 operands.
    N, size_in, size_out = 16, 32, 64
    params = init_resnet_block_fc_params(kp1, size_in, size_out)
    # fc_1.weight is zero-initialized by the module; also exercise a nonzero
    # w1 so the second matmul actually contributes.
    params["w1"] = 0.05 * jax.random.normal(kw1, params["w1"].shape, jnp.float32)
    x = jax.random.normal(kx, (N, size_in), jnp.float32)

    ref = _reference(x, params)
    out_f32 = resnet_block_fc(x, params, use_bf16_matmul=False)
    jax.block_until_ready(out_f32)
    assert out_f32.shape == (N, size_out)
    assert jnp.allclose(out_f32, ref, atol=1e-5, rtol=1e-5)

    # Case 2: default path — bf16 MXU operands, f32 accumulate + f32 residual.
    out_bf = resnet_block_fc(x, params)
    jax.block_until_ready(out_bf)
    assert jnp.allclose(out_bf, ref, atol=3e-2, rtol=3e-2)

    # Case 3: size_in == size_out -> identity shortcut path.
    params_id = init_resnet_block_fc_params(kp2, size_in)
    ref_id = _reference(x, params_id)
    out_id = resnet_block_fc(x, params_id, use_bf16_matmul=False)
    jax.block_until_ready(out_id)
    assert out_id.shape == (N, size_in)
    assert jnp.allclose(out_id, ref_id, atol=1e-5, rtol=1e-5)

    # Case 4: multi-tile grid with a manual tile override (N not divisible).
    N3 = 40
    x3 = jax.random.normal(kx2, (N3, size_in), jnp.float32)
    ref3 = _reference(x3, params)
    out3 = resnet_block_fc(x3, params, tile_n=16, use_bf16_matmul=False)
    jax.block_until_ready(out3)
    assert out3.shape == (N3, size_out)
    assert jnp.allclose(out3, ref3, atol=1e-5, rtol=1e-5)

    # Case 5: opt-in bf16 activation streaming (HBM-bandwidth-bound regime).
    out_act = resnet_block_fc(x3, params, bf16_activations=True)
    jax.block_until_ready(out_act)
    assert out_act.shape == (N3, size_out)
    assert jnp.allclose(out_act.astype(jnp.float32), ref3, atol=5e-2, rtol=5e-2)

    print("KERNEL_OK")
</pallas_src>

<mosaic_0001>
module attributes {stable_mosaic.version = 11 : i64} {
  func.func @_resnet_kernel_shortcut(%arg0: i32, %arg1: memref<8x128xf32, #tpu.memory_space<vmem>>, %arg2: memref<128x128xf32, #tpu.memory_space<vmem>>, %arg3: memref<1x128xf32, #tpu.memory_space<vmem>>, %arg4: memref<128x128xf32, #tpu.memory_space<vmem>>, %arg5: memref<1x128xf32, #tpu.memory_space<vmem>>, %arg6: memref<128x128xf32, #tpu.memory_space<vmem>>, %arg7: memref<8x128xf32, #tpu.memory_space<vmem>>) attributes {dimension_semantics = [#tpu.dimension_semantics<parallel>], iteration_bounds = array<i64: 2>, scalar_prefetch = 0 : i64, scratch_operands = 0 : i64, tpu.core_type = #tpu.core_type<tc>, window_params = [{transform_indices = @transform_0, window_bounds = array<i64: 8, 128>}, {pipeline_mode = #tpu.pipeline_mode<synchronous>, transform_indices = @transform_1, window_bounds = array<i64: 128, 128>}, {pipeline_mode = #tpu.pipeline_mode<synchronous>, transform_indices = @transform_2, window_bounds = array<i64: 1, 128>}, {pipeline_mode = #tpu.pipeline_mode<synchronous>, transform_indices = @transform_3, window_bounds = array<i64: 128, 128>}, {pipeline_mode = #tpu.pipeline_mode<synchronous>, transform_indices = @transform_4, window_bounds = array<i64: 1, 128>}, {pipeline_mode = #tpu.pipeline_mode<synchronous>, transform_indices = @transform_5, window_bounds = array<i64: 128, 128>}, {transform_indices = @transform_6, window_bounds = array<i64: 8, 128>}]} {
    %c0 = arith.constant 0 : index
    %c0_0 = arith.constant 0 : index
    %0 = vector.load %arg1[%c0, %c0_0] : memref<8x128xf32, #tpu.memory_space<vmem>>, vector<8x128xf32>
    %cst = arith.constant 0.000000e+00 : f32
    %1 = vector.broadcast %cst : f32 to vector<8x128xf32>
    %2 = arith.maximumf %0, %1 : vector<8x128xf32>
    %c0_1 = arith.constant 0 : index
    %c0_2 = arith.constant 0 : index
    %3 = vector.load %arg2[%c0_1, %c0_2] : memref<128x128xf32, #tpu.memory_space<vmem>>, vector<128x128xf32>
    %cst_3 = arith.constant dense<0.000000e+00> : vector<8x128xf32>
    %4 = tpu.matmul %2, %3, %cst_3 {dimension_numbers = #tpu.dot_dimension_numbers<[1], [0], [0], [1], [0, 0, 1, 1], [], []>} : vector<8x128xf32>, vector<128x128xf32>, vector<8x128xf32> -> vector<8x128xf32>
    %c0_4 = arith.constant 0 : index
    %c0_5 = arith.constant 0 : index
    %5 = vector.load %arg3[%c0_4, %c0_5] : memref<1x128xf32, #tpu.memory_space<vmem>>, vector<1x128xf32>
    %6 = vector.broadcast %5 : vector<1x128xf32> to vector<8x128xf32>
    %7 = arith.addf %4, %6 : vector<8x128xf32>
    %cst_6 = arith.constant 0.000000e+00 : f32
    %8 = vector.broadcast %cst_6 : f32 to vector<8x128xf32>
    %9 = arith.maximumf %7, %8 : vector<8x128xf32>
    %c0_7 = arith.constant 0 : index
    %c0_8 = arith.constant 0 : index
    %10 = vector.load %arg4[%c0_7, %c0_8] : memref<128x128xf32, #tpu.memory_space<vmem>>, vector<128x128xf32>
    %cst_9 = arith.constant dense<0.000000e+00> : vector<8x128xf32>
    %11 = tpu.matmul %9, %10, %cst_9 {dimension_numbers = #tpu.dot_dimension_numbers<[1], [0], [0], [1], [0, 0, 1, 1], [], []>} : vector<8x128xf32>, vector<128x128xf32>, vector<8x128xf32> -> vector<8x128xf32>
    %c0_10 = arith.constant 0 : index
    %c0_11 = arith.constant 0 : index
    %12 = vector.load %arg5[%c0_10, %c0_11] : memref<1x128xf32, #tpu.memory_space<vmem>>, vector<1x128xf32>
    %13 = vector.broadcast %12 : vector<1x128xf32> to vector<8x128xf32>
    %14 = arith.addf %11, %13 : vector<8x128xf32>
    %c0_12 = arith.constant 0 : index
    %c0_13 = arith.constant 0 : index
    %15 = vector.load %arg6[%c0_12, %c0_13] : memref<128x128xf32, #tpu.memory_space<vmem>>, vector<128x128xf32>
    %cst_14 = arith.constant dense<0.000000e+00> : vector<8x128xf32>
    %16 = tpu.matmul %0, %15, %cst_14 {dimension_numbers = #tpu.dot_dimension_numbers<[1], [0], [0], [1], [0, 0, 1, 1], [], []>} : vector<8x128xf32>, vector<128x128xf32>, vector<8x128xf32> -> vector<8x128xf32>
    %17 = arith.addf %16, %14 : vector<8x128xf32>
    %c0_15 = arith.constant 0 : index
    %c0_16 = arith.constant 0 : index
    %18 = vector.load %arg7[%c0_15, %c0_16] : memref<8x128xf32, #tpu.memory_space<vmem>>, vector<8x128xf32>
    tpu.vector_store %arg7[%c0_15, %c0_16], %17 {strides = array<i32>} : memref<8x128xf32, #tpu.memory_space<vmem>>, vector<8x128xf32>,
    return
  }
  func.func @transform_0(%arg0: i32) -> (i32, i32) {
    %c0_i32 = arith.constant 0 : i32
    %c0_i32_0 = arith.constant 0 : i32
    return %arg0, %c0_i32 : i32, i32
  }
  func.func @transform_1(%arg0: i32) -> (i32, i32) {
    %c0_i32 = arith.constant 0 : i32
    %c0_i32_0 = arith.constant 0 : i32
    %c0_i32_1 = arith.constant 0 : i32
    return %c0_i32, %c0_i32_0 : i32, i32
  }
  func.func @transform_2(%arg0: i32) -> (i32, i32) {
    %c0_i32 = arith.constant 0 : i32
    %c0_i32_0 = arith.constant 0 : i32
    %c0_i32_1 = arith.constant 0 : i32
    return %c0_i32, %c0_i32_0 : i32, i32
  }
  func.func @transform_3(%arg0: i32) -> (i32, i32) {
    %c0_i32 = arith.constant 0 : i32
    %c0_i32_0 = arith.constant 0 : i32
    %c0_i32_1 = arith.constant 0 : i32
    return %c0_i32, %c0_i32_0 : i32, i32
  }
  func.func @transform_4(%arg0: i32) -> (i32, i32) {
    %c0_i32 = arith.constant 0 : i32
    %c0_i32_0 = arith.constant 0 : i32
    %c0_i32_1 = arith.constant 0 : i32
    return %c0_i32, %c0_i32_0 : i32, i32
  }
  func.func @transform_5(%arg0: i32) -> (i32, i32) {
    %c0_i32 = arith.constant 0 : i32
    %c0_i32_0 = arith.constant 0 : i32
    %c0_i32_1 = arith.constant 0 : i32
    return %c0_i32, %c0_i32_0 : i32, i32
  }
  func.func @transform_6(%arg0: i32) -> (i32, i32) {
    %c0_i32 = arith.constant 0 : i32
    %c0_i32_0 = arith.constant 0 : i32
    return %arg0, %c0_i32 : i32, i32
  }
}

</mosaic_0001>

<llo_original>
// kernel: resnet_block_fc.1
$region0: #{resnet_block_fc.1}
  #allocation0 [shape = 'u32[]', space=smem, size = 0x4, offset = 0x4, fixed_abs, tag = 'smem constant byte address 0x4 - core index']
  #allocation1 [shape = 'u32[144,128]{1,0:T(1,128)}', space=vmem, size = 0x12000, scoped, tag = 'internal scratch']
  %s0 = inlined_call_operand.vmem [shape: f32[16,128], index: 0, kind: input, shape index: {}]
  %s1 = inlined_call_operand.vmem [shape: f32[128,128], index: 1, kind: input, shape index: {}]
  %s2 = inlined_call_operand.vmem [shape: f32[1,128], index: 2, kind: input, shape index: {}]
  %s3 = inlined_call_operand.vmem [shape: f32[128,128], index: 3, kind: input, shape index: {}]
  %s4 = inlined_call_operand.vmem [shape: f32[1,128], index: 4, kind: input, shape index: {}]
  %s5 = inlined_call_operand.vmem [shape: f32[128,128], index: 5, kind: input, shape index: {}]
  %s6 = inlined_call_operand.hbm [shape: f32[16,128], index: 6, kind: output, shape index: {}]
  %s7 = sld [smem:[#allocation0]]
  $region57: #{resnet_block_fc.1} parent=0
    _
  %s9 = ssub.s32 1, %s7
  %s10 = scalar_select 0, %s9, %s7
  $region1: #{resnet_block_fc.1} parent=0
    #allocation2 [shape = 'u8[8192]{0}', space=vmem, size = 0x2000, scoped, tag = 'output window, operand 0']
    #allocation3 [shape = 's32[2]{0}', space=sflag, size = 0x8, scoped, tag = 'scoped memory for resnet_block_fc.1']
    %11 = vsyncpa [#allocation3], 0
    %s12 = scalar_lea.sflag [#allocation3], 1
    %13 = vsyncpa %s12, 0
    loop: start=0, step=1, limit=4
    $region2: #{resnet_block_fc.1} parent=1 // loop_pre_header
      _
    $region3: #{resnet_block_fc.1} parent=1 // loop_header
      %s15 = sphi 0, %s19
      %p16 = scmp.ge.s32.totalorder %s15, 4
      %s25 = sphi 0, %s27
      %s28 = sphi 0, %s25
      %s29 = sphi 0, %s28
      %s45 = sphi 0, %s29
      %s49 = sphi 0, %s49
      %s51 = sphi 0, %s49
      %s52 = sphi 0, %s51
      %s66 = sphi 0, %s52
      %s70 = sphi 0, %s70
      %s72 = sphi 0, %s70
      %s73 = sphi 0, %s72
      %s87 = sphi 0, %s73
      %s91 = sphi 0, %s91
      %s93 = sphi 0, %s91
      %s94 = sphi 0, %s93
      %s108 = sphi 0, %s94
      %s112 = sphi 0, %s112
      %s114 = sphi 0, %s112
      %s115 = sphi 0, %s114
      %s129 = sphi 0, %s115
      %s133 = sphi 0, %s133
      %s135 = sphi 0, %s133
      %s136 = sphi 0, %s135
      %s150 = sphi 0, %s136
      %s156 = sphi 0, %s158
      %s159 = sphi 0, %s156
      %s160 = sphi 0, %s159
      %s176 = sphi 0, %s160
    $region4: #{resnet_block_fc.1} parent=1 // loop_header_branch
      %18 = sbr.rel (%p16) target = $region8
    $region5: #{resnet_block_fc.1} parent=1 // loop_body
      %s20 = ssub.s32 %s15, 1
      %s21 = ssub.s32 %s15, 2
      %s22 = sadd.s32 %s15, 1
      %s23 = ssub.s32 %s15, %s22
      %p24 = scmp.eq.s32.totalorder %s23, 0
      %s26 = sadd.s32 %s25, 1
      %s27 = scalar_select %p24, %s25, %s26
      %p30 = pneg %p24
      %p31 = scmp.eq.s32.totalorder %s15, 1
      %p32 = por %p30, %p31
      %p33 = scmp.ne.s32.totalorder %s25, %s28
      %p34 = scmp.eq.s32.totalorder %s15, 0
      %p35 = por %p33, %p34
      %p36 = scmp.ne.s32.totalorder %s25, %s28
      %p37 = scmp.eq.s32.totalorder %s20, 1
      %p38 = por %p36, %p37
      %p39 = scmp.ne.s32.totalorder %s28, %s29
      %p40 = scmp.eq.s32.totalorder %s20, 0
      %p41 = por %p39, %p40
      %p42 = scmp.ne.s32.totalorder %s28, %s29
      %p43 = scmp.eq.s32.totalorder %s21, 1
      %p44 = por %p42, %p43
      %p46 = scmp.ne.s32.totalorder %s29, %s45
      %p47 = scmp.eq.s32.totalorder %s21, 0
      %p48 = por %p46, %p47
      %s50 = sadd.s32 %s49, 1
      %p53 = scmp.eq.s32.totalorder %s15, 1
      %p54 = scmp.ne.s32.totalorder %s49, %s51
      %p55 = scmp.eq.s32.totalorder %s15, 0
      %p56 = por %p54, %p55
      %p57 = scmp.ne.s32.totalorder %s49, %s51
      %p58 = scmp.eq.s32.totalorder %s20, 1
      %p59 = por %p57, %p58
      %p60 = scmp.ne.s32.totalorder %s51, %s52
      %p61 = scmp.eq.s32.totalorder %s20, 0
      %p62 = por %p60, %p61
      %p63 = scmp.ne.s32.totalorder %s51, %s52
      %p64 = scmp.eq.s32.totalorder %s21, 1
      %p65 = por %p63, %p64
      %p67 = scmp.ne.s32.totalorder %s52, %s66
      %p68 = scmp.eq.s32.totalorder %s21, 0
      %p69 = por %p67, %p68
      %s71 = sadd.s32 %s70, 1
      %p74 = scmp.eq.s32.totalorder %s15, 1
      %p75 = scmp.ne.s32.totalorder %s70, %s72
      %p76 = scmp.eq.s32.totalorder %s15, 0
      %p77 = por %p75, %p76
      %p78 = scmp.ne.s32.totalorder %s70, %s72
      %p79 = scmp.eq.s32.totalorder %s20, 1
      %p80 = por %p78, %p79
      %p81 = scmp.ne.s32.totalorder %s72, %s73
      %p82 = scmp.eq.s32.totalorder %s20, 0
      %p83 = por %p81, %p82
      %p84 = scmp.ne.s32.totalorder %s72, %s73
      %p85 = scmp.eq.s32.totalorder %s21, 1
      %p86 = por %p84, %p85
      %p88 = scmp.ne.s32.totalorder %s73, %s87
      %p89 = scmp.eq.s32.totalorder %s21, 0
      %p90 = por %p88, %p89
      %s92 = sadd.s32 %s91, 1
      %p95 = scmp.eq.s32.totalorder %s15, 1
      %p96 = scmp.ne.s32.totalorder %s91, %s93
      %p97 = scmp.eq.s32.totalorder %s15, 0
      %p98 = por %p96, %p97
      %p99 = scmp.ne.s32.totalorder %s91, %s93
      %p100 = scmp.eq.s32.totalorder %s20, 1
      %p101 = por %p99, %p100
      %p102 = scmp.ne.s32.totalorder %s93, %s94
      %p103 = scmp.eq.s32.totalorder %s20, 0
      %p104 = por %p102, %p103
      %p105 = scmp.ne.s32.totalorder %s93, %s94
      %p106 = scmp.eq.s32.totalorder %s21, 1
      %p107 = por %p105, %p106
      %p109 = scmp.ne.s32.totalorder %s94, %s108
      %p110 = scmp.eq.s32.totalorder %s21, 0
      %p111 = por %p109, %p110
      %s113 = sadd.s32 %s112, 1
      %p116 = scmp.eq.s32.totalorder %s15, 1
      %p117 = scmp.ne.s32.totalorder %s112, %s114
      %p118 = scmp.eq.s32.totalorder %s15, 0
      %p119 = por %p117, %p118
      %p120 = scmp.ne.s32.totalorder %s112, %s114
      %p121 = scmp.eq.s32.totalorder %s20, 1
      %p122 = por %p120, %p121
      %p123 = scmp.ne.s32.totalorder %s114, %s115
      %p124 = scmp.eq.s32.totalorder %s20, 0
      %p125 = por %p123, %p124
      %p126 = scmp.ne.s32.totalorder %s114, %s115
      %p127 = scmp.eq.s32.totalorder %s21, 1
      %p128 = por %p126, %p127
      %p130 = scmp.ne.s32.totalorder %s115, %s129
      %p131 = scmp.eq.s32.totalorder %s21, 0
      %p132 = por %p130, %p131
      %s134 = sadd.s32 %s133, 1
      %p137 = scmp.eq.s32.totalorder %s15, 1
      %p138 = scmp.ne.s32.totalorder %s133, %s135
      %p139 = scmp.eq.s32.totalorder %s15, 0
      %p140 = por %p138, %p139
      %p141 = scmp.ne.s32.totalorder %s133, %s135
      %p142 = scmp.eq.s32.totalorder %s20, 1
      %p143 = por %p141, %p142
      %p144 = scmp.ne.s32.totalorder %s135, %s136
      %p145 = scmp.eq.s32.totalorder %s20, 0
      %p146 = por %p144, %p145
      %p147 = scmp.ne.s32.totalorder %s135, %s136
      %p148 = scmp.eq.s32.totalorder %s21, 1
      %p149 = por %p147, %p148
      %p151 = scmp.ne.s32.totalorder %s136, %s150
      %p152 = scmp.eq.s32.totalorder %s21, 0
      %p153 = por %p151, %p152
      %s154 = ssub.s32 %s15, %s22
      %p155 = scmp.eq.s32.totalorder %s154, 0
      %s157 = sadd.s32 %s156, 1
      %s158 = scalar_select %p155, %s156, %s157
      %p161 = pneg %p155
      %p162 = scmp.eq.s32.totalorder %s15, 1
      %p163 = por %p161, %p162
      %p164 = scmp.ne.s32.totalorder %s156, %s159
      %p165 = scmp.eq.s32.totalorder %s15, 0
      %p166 = por %p164, %p165
      %p167 = scmp.ne.s32.totalorder %s156, %s159
      %p168 = scmp.eq.s32.totalorder %s20, 1
      %p169 = por %p167, %p168
      %p170 = scmp.ne.s32.totalorder %s159, %s160
      %p171 = scmp.eq.s32.totalorder %s20, 0
      %p172 = por %p170, %p171
      %p173 = scmp.ne.s32.totalorder %s159, %s160
      %p174 = scmp.eq.s32.totalorder %s21, 1
      %p175 = por %p173, %p174
      %p177 = scmp.ne.s32.totalorder %s160, %s176
      %p178 = scmp.eq.s32.totalorder %s21, 0
      %p179 = por %p177, %p178
      %p180 = scmp.le.s32.totalorder 1, %s15
      %p181 = scmp.lt.s32.totalorder %s15, 3
      %p182 = pnand %p180, %p181
      %p183 = pneg %p182
      // Predicated region
      $region9: #{resnet_block_fc.1} parent=5 // pred_check
        _
      $region10: #{resnet_block_fc.1} parent=5 // pred_check_branch
        %185 = sbr.rel (%p182) target = $region12
      $region11: #{resnet_block_fc.1} parent=5 // pred_region
        %s186 = ssub.s32 %s15, 1
        // Predicated region
        $region13: #{resnet_block_fc.1} parent=11 // pred_check
          %p187 = pneg %p62
        $region14: #{resnet_block_fc.1} parent=11 // pred_check_branch
          %189 = sbr.rel (%p187) target = $region16
        $region15: #{resnet_block_fc.1} parent=11 // pred_region
          _
        $region16: #{resnet_block_fc.1} parent=11 // pred_fallthru
          _
        // Predicated region
        $region17: #{resnet_block_fc.1} parent=11 // pred_check
          %p190 = pneg %p83
        $region18: #{resnet_block_fc.1} parent=11 // pred_check_branch
          %192 = sbr.rel (%p190) target = $region20
        $region19: #{resnet_block_fc.1} parent=11 // pred_region
          _
        $region20: #{resnet_block_fc.1} parent=11 // pred_fallthru
          _
        // Predicated region
        $region21: #{resnet_block_fc.1} parent=11 // pred_check
          %p193 = pneg %p104
        $region22: #{resnet_block_fc.1} parent=11 // pred_check_branch
          %195 = sbr.rel (%p193) target = $region24
        $region23: #{resnet_block_fc.1} parent=11 // pred_region
          _
        $region24: #{resnet_block_fc.1} parent=11 // pred_fallthru
          _
        // Predicated region
        $region25: #{resnet_block_fc.1} parent=11 // pred_check
          %p196 = pneg %p125
        $region26: #{resnet_block_fc.1} parent=11 // pred_check_branch
          %198 = sbr.rel (%p196) target = $region28
        $region27: #{resnet_block_fc.1} parent=11 // pred_region
          _
        $region28: #{resnet_block_fc.1} parent=11 // pred_fallthru
          _
        // Predicated region
        $region29: #{resnet_block_fc.1} parent=11 // pred_check
          %p199 = pneg %p146
        $region30: #{resnet_block_fc.1} parent=11 // pred_check_branch
          %201 = sbr.rel (%p199) target = $region32
        $region31: #{resnet_block_fc.1} parent=11 // pred_region
          _
        $region32: #{resnet_block_fc.1} parent=11 // pred_fallthru
          _
      $region12: #{resnet_block_fc.1} parent=5 // pred_fallthru
        _
      %p202 = scmp.lt.s32.totalorder %s15, 2
      // Predicated region
      $region33: #{resnet_block_fc.1} parent=5 // pred_check
        %p203 = pneg %p202
      $region34: #{resnet_block_fc.1} parent=5 // pred_check_branch
        %205 = sbr.rel (%p203) target = $region36
      $region35: #{resnet_block_fc.1} parent=5 // pred_region
        // Predicated region
        $region37: #{resnet_block_fc.1} parent=35 // pred_check
          %p206 = pneg %p35
        $region38: #{resnet_block_fc.1} parent=35 // pred_check_branch
          %208 = sbr.rel (%p206) target = $region40
        $region39: #{resnet_block_fc.1} parent=35 // pred_region
          %p209 = scmp.lt.s32.totalorder %s15, 1
          %s210 = scalar_select %p209, %s15, 1
          %s211 = smul.addr %s210, 8
          %s212 = scalar_lea.vmem %s0, %s211
        $region40: #{resnet_block_fc.1} parent=35 // pred_fallthru
          _
      $region36: #{resnet_block_fc.1} parent=5 // pred_fallthru
        _
      %p213 = scmp.le.s32.totalorder 1, %s15
      %p214 = scmp.lt.s32.totalorder %s15, 3
      %p215 = pnand %p213, %p214
      %p216 = pneg %p215
      // Predicated region
      $region41: #{resnet_block_fc.1} parent=5 // pred_check
        _
      $region42: #{resnet_block_fc.1} parent=5 // pred_check_branch
        %218 = sbr.rel (%p215) target = $region44
      $region43: #{resnet_block_fc.1} parent=5 // pred_region
        %s219 = ssub.s32 %s15, 1
        %p220 = scmp.lt.s32.totalorder %s20, 1
        %s221 = scalar_select %p220, %s20, 1
        %s222 = smul.addr %s221, 8
        %s223 = scalar_lea.vmem %s0, %s222
        %p224 = pneg %p41
        %p225 = pneg %p38
        %p226 = pneg %p62
        %p227 = pneg %p59
        %p228 = pneg %p83
        %p229 = pneg %p80
        %p230 = pneg %p104
        %p231 = pneg %p101
        %p232 = pneg %p125
        %p233 = pneg %p122
        %p234 = pneg %p146
        %p235 = pneg %p143
        %p236 = pneg %p172
        %p237 = pneg %p169
        %s238 = sand.u32 %s159, 1
        %s239 = scalar_lea.sflag [#allocation3], %s238
        %s240 = sand.u32 %s159, 1
        %s241 = smul.addr %s240, 8
        %s242 = scalar_lea.vmem [#allocation2], %s241
        %p243 = scmp.lt.s32.totalorder %s20, 1
        %s244 = scalar_select %p243, %s20, 1
        %s245 = smul.addr %s244, 8
        %s246 = scalar_lea.vmem %s0, %s245
        %v247 = vld [vmem:[%s246] sm:$0xff]
        %v248 = vmax.f32 %v247, 0.0
        %v249 = vld [vmem:[%s1] sm:$0xff]
        %v250 = vld [vmem:[%s1 + $0x8] sm:$0xff]
        %v251 = vld [vmem:[%s1 + $0x10] sm:$0xff]
        %v252 = vld [vmem:[%s1 + $0x18] sm:$0xff]
        %v253 = vld [vmem:[%s1 + $0x20] sm:$0xff]
        %v254 = vld [vmem:[%s1 + $0x28] sm:$0xff]
        %v255 = vld [vmem:[%s1 + $0x30] sm:$0xff]
        %v256 = vld [vmem:[%s1 + $0x38] sm:$0xff]
        %v257 = vld [vmem:[%s1 + $0x40] sm:$0xff]
        %v258 = vld [vmem:[%s1 + $0x48] sm:$0xff]
        %v259 = vld [vmem:[%s1 + $0x50] sm:$0xff]
        %v260 = vld [vmem:[%s1 + $0x58] sm:$0xff]
        %v261 = vld [vmem:[%s1 + $0x60] sm:$0xff]
        %v262 = vld [vmem:[%s1 + $0x68] sm:$0xff]
        %v263 = vld [vmem:[%s1 + $0x70] sm:$0xff]
        %v264 = vld [vmem:[%s1 + $0x78] sm:$0xff]
        %v265 = vld [vmem:[%s2] sm:$0x1]
        %v267 = vlaneseq
        %v268 = vshrl.u32 %v267, 7
        %v269 = vsub.s32 0, %v268
        %v270 = vrot.slane %v265, %v269
        %272 = vmatprep.subr.mxu0 0.0
        %273 = vmatpush1.msra.mxu0 %v249
        %274 = vmatprep.subr.mxu0 0.0
        %275 = vmatpush1.msra.mxu0 %v250
        %276 = vmatprep.subr.mxu0 0.0
        %277 = vmatpush1.msra.mxu0 %v251
        %278 = vmatprep.subr.mxu0 0.0
        %279 = vmatpush1.msra.mxu0 %v252
        %280 = vmatprep.subr.mxu0 0.0
        %281 = vmatpush1.msra.mxu0 %v253
        %282 = vmatprep.subr.mxu0 0.0
        %283 = vmatpush1.msra.mxu0 %v254
        %284 = vmatprep.subr.mxu0 0.0
        %285 = vmatpush1.msra.mxu0 %v255
        %286 = vmatprep.subr.mxu0 0.0
        %287 = vmatpush1.msra.mxu0 %v256
        %288 = vmatprep.subr.mxu0 0.0
        %289 = vmatpush1.msra.mxu0 %v257
        %290 = vmatprep.subr.mxu0 0.0
        %291 = vmatpush1.msra.mxu0 %v258
        %292 = vmatprep.subr.mxu0 0.0
        %293 = vmatpush1.msra.mxu0 %v259
        %294 = vmatprep.subr.mxu0 0.0
        %295 = vmatpush1.msra.mxu0 %v260
        %296 = vmatprep.subr.mxu0 0.0
        %297 = vmatpush1.msra.mxu0 %v261
        %298 = vmatprep.subr.mxu0 0.0
        %299 = vmatpush1.msra.mxu0 %v262
        %300 = vmatprep.subr.mxu0 0.0
        %301 = vmatpush1.msra.mxu0 %v263
        %302 = vmatprep.subr.mxu0 0.0
        %303 = vmatpush1.msra.mxu0 %v264
        %304 = vmatprep.subr.mxu0 0.0
        %305 = vmatpush1.msra.mxu0 0.0
        %306 = vmatprep.subr.mxu0 0.0
        %307 = vmatpush1.msra.mxu0 0.0
        %308 = vmatprep.subr.mxu0 0.0
        %309 = vmatpush1.msra.mxu0 0.0
        %310 = vmatprep.subr.mxu0 0.0
        %311 = vmatpush1.msra.mxu0 0.0
        %312 = vmatprep.subr.mxu0 0.0
        %313 = vmatpush1.msra.mxu0 0.0
        %314 = vmatprep.subr.mxu0 0.0
        %315 = vmatpush1.msra.mxu0 0.0
        %316 = vmatprep.subr.mxu0 0.0
        %317 = vmatpush1.msra.mxu0 0.0
        %318 = vmatprep.subr.mxu0 0.0
        %319 = vmatpush1.msra.mxu0 0.0
        %320 = vmatprep.subr.mxu0 0.0
        %321 = vmatpush1.msra.mxu0 0.0
        %322 = vmatprep.subr.mxu0 0.0
        %323 = vmatpush1.msra.mxu0 0.0
        %324 = vmatprep.subr.mxu0 0.0
        %325 = vmatpush1.msra.mxu0 0.0
        %326 = vmatprep.subr.mxu0 0.0
        %327 = vmatpush1.msra.mxu0 0.0
        %328 = vmatprep.subr.mxu0 0.0
        %329 = vmatpush1.msra.mxu0 0.0
        %330 = vmatprep.subr.mxu0 0.0
        %331 = vmatpush1.msra.mxu0 0.0
        %332 = vmatprep.subr.mxu0 0.0
        %333 = vmatpush1.msra.mxu0 0.0
        %334 = vmatprep.subr.mxu0 0.0
        %335 = vmatpush1.msra.mxu0 0.0
        %336 = vmatprep.mubr.f32.mxu0 0.0
        %337 = vmatmul.mubr.f32.gmra.mrb[0].mxu0 %v248
        %v338 = vpop.f32.mrb[0].mxu0
        %v339 = vadd.f32 %v270, %v338
        %v340 = vpop.f32.mrb[0].mxu0
        %341 = vdwg.mxu0
        %v342 = vmax.f32 %v339, 0.0
        %v343 = vld [vmem:[%s3] sm:$0xff]
        %v344 = vld [vmem:[%s3 + $0x8] sm:$0xff]
        %v345 = vld [vmem:[%s3 + $0x10] sm:$0xff]
        %v346 = vld [vmem:[%s3 + $0x18] sm:$0xff]
        %v347 = vld [vmem:[%s3 + $0x20] sm:$0xff]
        %v348 = vld [vmem:[%s3 + $0x28] sm:$0xff]
        %v349 = vld [vmem:[%s3 + $0x30] sm:$0xff]
        %v350 = vld [vmem:[%s3 + $0x38] sm:$0xff]
        %v351 = vld [vmem:[%s3 + $0x40] sm:$0xff]
        %v352 = vld [vmem:[%s3 + $0x48] sm:$0xff]
        %v353 = vld [vmem:[%s3 + $0x50] sm:$0xff]
        %v354 = vld [vmem:[%s3 + $0x58] sm:$0xff]
        %v355 = vld [vmem:[%s3 + $0x60] sm:$0xff]
        %v356 = vld [vmem:[%s3 + $0x68] sm:$0xff]
        %v357 = vld [vmem:[%s3 + $0x70] sm:$0xff]
        %v358 = vld [vmem:[%s3 + $0x78] sm:$0xff]
        %v359 = vld [vmem:[%s4] sm:$0x1]
        %v361 = vlaneseq
        %v362 = vshrl.u32 %v361, 7
        %v363 = vsub.s32 0, %v362
        %v364 = vrot.slane %v359, %v363
        %366 = vmatprep.subr.mxu0 0.0
        %367 = vmatpush1.msra.mxu0 %v343
        %368 = vmatprep.subr.mxu0 0.0
        %369 = vmatpush1.msra.mxu0 %v344
        %370 = vmatprep.subr.mxu0 0.0
        %371 = vmatpush1.msra.mxu0 %v345
        %372 = vmatprep.subr.mxu0 0.0
        %373 = vmatpush1.msra.mxu0 %v346
        %374 = vmatprep.subr.mxu0 0.0
        %375 = vmatpush1.msra.mxu0 %v347
        %376 = vmatprep.subr.mxu0 0.0
        %377 = vmatpush1.msra.mxu0 %v348
        %378 = vmatprep.subr.mxu0 0.0
        %379 = vmatpush1.msra.mxu0 %v349
        %380 = vmatprep.subr.mxu0 0.0
        %381 = vmatpush1.msra.mxu0 %v350
        %382 = vmatprep.subr.mxu0 0.0
        %383 = vmatpush1.msra.mxu0 %v351
        %384 = vmatprep.subr.mxu0 0.0
        %385 = vmatpush1.msra.mxu0 %v352
        %386 = vmatprep.subr.mxu0 0.0
        %387 = vmatpush1.msra.mxu0 %v353
        %388 = vmatprep.subr.mxu0 0.0
        %389 = vmatpush1.msra.mxu0 %v354
        %390 = vmatprep.subr.mxu0 0.0
        %391 = vmatpush1.msra.mxu0 %v355
        %392 = vmatprep.subr.mxu0 0.0
        %393 = vmatpush1.msra.mxu0 %v356
        %394 = vmatprep.subr.mxu0 0.0
        %395 = vmatpush1.msra.mxu0 %v357
        %396 = vmatprep.subr.mxu0 0.0
        %397 = vmatpush1.msra.mxu0 %v358
        %398 = vmatprep.subr.mxu0 0.0
        %399 = vmatpush1.msra.mxu0 0.0
        %400 = vmatprep.subr.mxu0 0.0
        %401 = vmatpush1.msra.mxu0 0.0
        %402 = vmatprep.subr.mxu0 0.0
        %403 = vmatpush1.msra.mxu0 0.0
        %404 = vmatprep.subr.mxu0 0.0
        %405 = vmatpush1.msra.mxu0 0.0
        %406 = vmatprep.subr.mxu0 0.0
        %407 = vmatpush1.msra.mxu0 0.0
        %408 = vmatprep.subr.mxu0 0.0
        %409 = vmatpush1.msra.mxu0 0.0
        %410 = vmatprep.subr.mxu0 0.0
        %411 = vmatpush1.msra.mxu0 0.0
        %412 = vmatprep.subr.mxu0 0.0
        %413 = vmatpush1.msra.mxu0 0.0
        %414 = vmatprep.subr.mxu0 0.0
        %415 = vmatpush1.msra.mxu0 0.0
        %416 = vmatprep.subr.mxu0 0.0
        %417 = vmatpush1.msra.mxu0 0.0
        %418 = vmatprep.subr.mxu0 0.0
        %419 = vmatpush1.msra.mxu0 0.0
        %420 = vmatprep.subr.mxu0 0.0
        %421 = vmatpush1.msra.mxu0 0.0
        %422 = vmatprep.subr.mxu0 0.0
        %423 = vmatpush1.msra.mxu0 0.0
        %424 = vmatprep.subr.mxu0 0.0
        %425 = vmatpush1.msra.mxu0 0.0
        %426 = vmatprep.subr.mxu0 0.0
        %427 = vmatpush1.msra.mxu0 0.0
        %428 = vmatprep.subr.mxu0 0.0
        %429 = vmatpush1.msra.mxu0 0.0
        %430 = vmatprep.mubr.f32.mxu0 0.0
        %431 = vmatmul.mubr.f32.gmra.mrb[0].mxu0 %v342
        %v432 = vpop.f32.mrb[0].mxu0
        %v433 = vadd.f32 %v364, %v432
        %v434 = vpop.f32.mrb[0].mxu0
        %435 = vdwg.mxu0
        %v436 = vld [vmem:[%s5] sm:$0xff]
        %v437 = vld [vmem:[%s5 + $0x8] sm:$0xff]
        %v438 = vld [vmem:[%s5 + $0x10] sm:$0xff]
        %v439 = vld [vmem:[%s5 + $0x18] sm:$0xff]
        %v440 = vld [vmem:[%s5 + $0x20] sm:$0xff]
        %v441 = vld [vmem:[%s5 + $0x28] sm:$0xff]
        %v442 = vld [vmem:[%s5 + $0x30] sm:$0xff]
        %v443 = vld [vmem:[%s5 + $0x38] sm:$0xff]
        %v444 = vld [vmem:[%s5 + $0x40] sm:$0xff]
        %v445 = vld [vmem:[%s5 + $0x48] sm:$0xff]
        %v446 = vld [vmem:[%s5 + $0x50] sm:$0xff]
        %v447 = vld [vmem:[%s5 + $0x58] sm:$0xff]
        %v448 = vld [vmem:[%s5 + $0x60] sm:$0xff]
        %v449 = vld [vmem:[%s5 + $0x68] sm:$0xff]
        %v450 = vld [vmem:[%s5 + $0x70] sm:$0xff]
        %v451 = vld [vmem:[%s5 + $0x78] sm:$0xff]
        %452 = vmatprep.subr.mxu0 0.0
        %453 = vmatpush1.msra.mxu0 %v436
        %454 = vmatprep.subr.mxu0 0.0
        %455 = vmatpush1.msra.mxu0 %v437
        %456 = vmatprep.subr.mxu0 0.0
        %457 = vmatpush1.msra.mxu0 %v438
        %458 = vmatprep.subr.mxu0 0.0
        %459 = vmatpush1.msra.mxu0 %v439
        %460 = vmatprep.subr.mxu0 0.0
        %461 = vmatpush1.msra.mxu0 %v440
        %462 = vmatprep.subr.mxu0 0.0
        %463 = vmatpush1.msra.mxu0 %v441
        %464 = vmatprep.subr.mxu0 0.0
        %465 = vmatpush1.msra.mxu0 %v442
        %466 = vmatprep.subr.mxu0 0.0
        %467 = vmatpush1.msra.mxu0 %v443
        %468 = vmatprep.subr.mxu0 0.0
        %469 = vmatpush1.msra.mxu0 %v444
        %470 = vmatprep.subr.mxu0 0.0
        %471 = vmatpush1.msra.mxu0 %v445
        %472 = vmatprep.subr.mxu0 0.0
        %473 = vmatpush1.msra.mxu0 %v446
        %474 = vmatprep.subr.mxu0 0.0
        %475 = vmatpush1.msra.mxu0 %v447
        %476 = vmatprep.subr.mxu0 0.0
        %477 = vmatpush1.msra.mxu0 %v448
        %478 = vmatprep.subr.mxu0 0.0
        %479 = vmatpush1.msra.mxu0 %v449
        %480 = vmatprep.subr.mxu0 0.0
        %481 = vmatpush1.msra.mxu0 %v450
        %482 = vmatprep.subr.mxu0 0.0
        %483 = vmatpush1.msra.mxu0 %v451
        %484 = vmatprep.subr.mxu0 0.0
        %485 = vmatpush1.msra.mxu0 0.0
        %486 = vmatprep.subr.mxu0 0.0
        %487 = vmatpush1.msra.mxu0 0.0
        %488 = vmatprep.subr.mxu0 0.0
        %489 = vmatpush1.msra.mxu0 0.0
        %490 = vmatprep.subr.mxu0 0.0
        %491 = vmatpush1.msra.mxu0 0.0
        %492 = vmatprep.subr.mxu0 0.0
        %493 = vmatpush1.msra.mxu0 0.0
        %494 = vmatprep.subr.mxu0 0.0
        %495 = vmatpush1.msra.mxu0 0.0
        %496 = vmatprep.subr.mxu0 0.0
        %497 = vmatpush1.msra.mxu0 0.0
        %498 = vmatprep.subr.mxu0 0.0
        %499 = vmatpush1.msra.mxu0 0.0
        %500 = vmatprep.subr.mxu0 0.0
        %501 = vmatpush1.msra.mxu0 0.0
        %502 = vmatprep.subr.mxu0 0.0
        %503 = vmatpush1.msra.mxu0 0.0
        %504 = vmatprep.subr.mxu0 0.0
        %505 = vmatpush1.msra.mxu0 0.0
        %506 = vmatprep.subr.mxu0 0.0
        %507 = vmatpush1.msra.mxu0 0.0
        %508 = vmatprep.subr.mxu0 0.0
        %509 = vmatpush1.msra.mxu0 0.0
        %510 = vmatprep.subr.mxu0 0.0
        %511 = vmatpush1.msra.mxu0 0.0
        %512 = vmatprep.subr.mxu0 0.0
        %513 = vmatpush1.msra.mxu0 0.0
        %514 = vmatprep.subr.mxu0 0.0
        %515 = vmatpush1.msra.mxu0 0.0
        %516 = vmatprep.mubr.f32.mxu0 0.0
        %517 = vmatmul.mubr.f32.gmra.mrb[0].mxu0 %v247
        %v518 = vpop.f32.mrb[0].mxu0
        %v519 = vadd.f32 %v433, %v518
        %v520 = vpop.f32.mrb[0].mxu0
        %521 = vdwg.mxu0
        %522 = vst [vmem:[%s242] sm:$0xff] %v519
        %s523 = sand.u32 %s159, 1
        %s524 = scalar_lea.sflag [#allocation3], %s523
        %s525 = sand.u32 %s159, 1
        %s526 = smul.addr %s525, 8
        %s527 = scalar_lea.vmem [#allocation2], %s526
        // Predicated region
        $region45: #{resnet_block_fc.1} parent=43 // pred_check
          %p528 = pneg %p169
        $region46: #{resnet_block_fc.1} parent=43 // pred_check_branch
          %530 = sbr.rel (%p528) target = $region48
        $region47: #{resnet_block_fc.1} parent=43 // pred_region
          %s532 = ssub.s32 128, 128
          %533 = vsyncadd %s524, %s532
          %s534 = smul.addr %s20, 128
          %s535 = scalar_lea.hbm %s6, %s534
          %s537 = sshll.u32 %s527, 4
          %s538 = int_to_ptr.vmem [resolvable:$true] %s537
          %540 = dma.vmem_to_hbm [thread:$0]  %s538, 128, %s535, %s524
        $region48: #{resnet_block_fc.1} parent=43 // pred_fallthru
          _
      $region44: #{resnet_block_fc.1} parent=5 // pred_fallthru
        _
      %p541 = scmp.le.s32.totalorder 2, %s15
      // Predicated region
      $region49: #{resnet_block_fc.1} parent=5 // pred_check
        %p542 = pneg %p541
      $region50: #{resnet_block_fc.1} parent=5 // pred_check_branch
        %544 = sbr.rel (%p542) target = $region52
      $region51: #{resnet_block_fc.1} parent=5 // pred_region
        %s545 = ssub.s32 %s15, 2
        // Predicated region
        $region53: #{resnet_block_fc.1} parent=51 // pred_check
          %p546 = pneg %p175
        $region54: #{resnet_block_fc.1} parent=51 // pred_check_branch
          %548 = sbr.rel (%p546) target = $region56
        $region55: #{resnet_block_fc.1} parent=51 // pred_region
          %s549 = sand.u32 %s160, 1
          %s550 = scalar_lea.sflag [#allocation3], %s549
          %s551 = sand.u32 %s160, 1
          %s552 = smul.addr %s551, 8
          %s553 = scalar_lea.vmem [#allocation2], %s552
          %554 = dma.done %s550, 128
        $region56: #{resnet_block_fc.1} parent=51 // pred_fallthru
          _
      $region52: #{resnet_block_fc.1} parent=5 // pred_fallthru
        _
    $region6: #{resnet_block_fc.1} parent=1 // loop_footer
      %s19 = sadd.s32 1, %s15
    $region7: #{resnet_block_fc.1} parent=1 // loop_footer_branch
      %14 = sbr.rel target = $region3
    $region8: #{resnet_block_fc.1} parent=1 // loop_exit
      _
    %555 = vsyncpa [#allocation3], 1
    %s556 = scalar_lea.sflag [#allocation3], 1
    %557 = vsyncpa %s556, 1

</llo_original>
